<compile_context>
chip_gen: v5e
topology: v5e:2x2
jax: 0.10.0
libtpu: 0.0.40
codegen_flags: <defaults>
</compile_context>

<pallas_src>
import functools
import math

import jax
import jax.numpy as jnp
from jax.experimental import pallas as pl
from jax.experimental.pallas import tpu as pltpu

_LANE = 128
_NEG_INF = -1e30


def _round_up(v, m):
    return ((v + m - 1) // m) * m


def _choose_batch_block(batch, channels, target_rows, align):
    """Batch elements folded into one grid step.

    Bt*channels (the folded matmul row dim) is kept a multiple of `align` (sublane
    alignment of the grid-blocked x/out arrays; 8 for f32, 16 for bf16) and close to
    `target_rows` (~MXU height: 128 on v5e, 256 on v6e/v7x), without over-padding
    tiny batches.
    """
    g = align // math.gcd(channels, align)          # Bt must be a multiple of g
    cap = max(g, (max(1, target_rows // channels) // g) * g)
    return max(g, min(cap, _round_up(batch, g)))


def _block_diag_mask(bt, channels):
    """(R, R) additive score bias: 0 inside each batch element's (C, C) block and
    -1e30 outside, so a full-cross (R, R) score matmul + one softmax reproduces the
    per-batch (C, C) softmax exactly (off-block entries exp to 0)."""
    r = jnp.arange(bt * channels) // channels
    return jnp.where(r[:, None] == r[None, :], 0.0, _NEG_INF).astype(jnp.float32)


# ---------------------------------------------------------------------------
# Single-head layer: exactly the PyTorch `selfAttentionLayer` forward.
# ---------------------------------------------------------------------------
def _self_attn_kernel(x_ref, w1_ref, b1_ref, w2_ref, b2_ref, mask_ref, sel_ref, o_ref):
    x2 = x_ref[...]                                                   # (R, L) folded rows
    # Two projection matmuls at full MXU row height.
    a = jnp.dot(x2, w1_ref[...], preferred_element_type=jnp.float32) + b1_ref[...]
    b = jnp.dot(x2, w2_ref[...], preferred_element_type=jnp.float32) + b2_ref[...]
    # Full-cross scores (contract last dims of both -> no transpose materialized);
    # per-batch isolation is an additive constant mask.
    s = jax.lax.dot_general(a, b, (((1,), (1,)), ((), ())),
                            preferred_element_type=jnp.float32)       # (R, R)
    s = s + mask_ref[...]
    s = s - jnp.max(s, axis=-1, keepdims=True)
    e = jnp.exp(s)
    inv = pl.reciprocal(jnp.sum(e, axis=-1, keepdims=True), approx=True)
    p = e * inv                                     # off-block entries are exactly 0
    # Compact each row's C in-block probabilities into lanes [0, C) of a lane-dense
    # (R, 128) output with one matmul against a constant 0/1 selection matrix.
    o_ref[...] = jnp.dot(p, sel_ref[...], preferred_element_type=jnp.float32)


def self_attention_layer(x, w1, b1, w2, b2, *, batch_block=None, target_rows=256):
    """x:(B,C,L), w1/w2:(L,M) (in,out layout), b1/b2:(M,) -> (B,C,C) float32."""
    B, C, L = x.shape
    M = w1.shape[-1]
    Bt = (_choose_batch_block(B, C, target_rows, 8)
          if batch_block is None else batch_block)
    Bp = _round_up(B, Bt)
    R = Bt * C
    lane_pad = _round_up(C, _LANE)

    # Wrapper-side layout plumbing (pure XLA): batch padded + folded into rows,
    # constant block-diagonal mask and selection matrix for the lane-dense output.
    x2 = jnp.zeros((Bp, C, L), jnp.float32).at[:B].set(x.astype(jnp.float32))
    x2 = x2.reshape(Bp * C, L)
    b1r = b1.reshape(1, M).astype(jnp.float32)
    b2r = b2.reshape(1, M).astype(jnp.float32)
    mask = _block_diag_mask(Bt, C)                                        # (R, R)
    sel = (jnp.arange(lane_pad)[None, :] ==
           (jnp.arange(R) % C)[:, None]).astype(jnp.float32)              # (R, lane_pad)

    out = pl.pallas_call(
        _self_attn_kernel,
        out_shape=jax.ShapeDtypeStruct((Bp * C, lane_pad), jnp.float32),
        grid_spec=pltpu.PrefetchScalarGridSpec(
            num_scalar_prefetch=0,
            grid=(Bp // Bt,),
            in_specs=[
                pl.BlockSpec((R, L), lambda i: (i, 0)),           # x rows (batch folded)
                pl.BlockSpec((L, M), lambda i: (0, 0)),           # W1 (constant -> no re-DMA)
                pl.BlockSpec((1, M), lambda i: (0, 0)),           # b1
                pl.BlockSpec((L, M), lambda i: (0, 0)),           # W2
                pl.BlockSpec((1, M), lambda i: (0, 0)),           # b2
                pl.BlockSpec((R, R), lambda i: (0, 0)),           # block-diag mask
                pl.BlockSpec((R, lane_pad), lambda i: (0, 0)),    # selection matrix
            ],
            out_specs=pl.BlockSpec((R, lane_pad), lambda i: (i, 0)),
        ),
        compiler_params=pltpu.CompilerParams(dimension_semantics=("parallel",)),
    )(x2, w1.astype(jnp.float32), b1r, w2.astype(jnp.float32), b2r, mask, sel)

    return out.reshape(Bp, C, lane_pad)[:B, :, :C]


# ---------------------------------------------------------------------------
# Multi-head layer (k independent selfAttentionLayers + concat / linear / softmax).
# ---------------------------------------------------------------------------
def _mha_kernel(x_ref, w1_ref, b1_ref, w2_ref, b2_ref, mask_ref, wf_ref, bf_ref,
                o_ref, *, k, head_pad, compute_dtype):
    R = x_ref.shape[0]
    x2 = x_ref[...]                                     # (R, L), already compute dtype
    mask = mask_ref[...]                                # (R, R) f32
    # Fused projections: 2 wide MXU matmuls (N = k*head_pad).  Per-head blocks are
    # zero-padded to 128 lanes so the per-head slices below are lane-tile aligned.
    a_all = jnp.dot(x2, w1_ref[...], preferred_element_type=jnp.float32) + b1_ref[...]
    b_all = jnp.dot(x2, w2_ref[...], preferred_element_type=jnp.float32) + b2_ref[...]

    # Per-head full-cross scores (R, R); k is small and static.  The zero pad lanes
    # contribute nothing to the contraction.
    scores = []
    for i in range(k):
        ai = a_all[:, i * head_pad:(i + 1) * head_pad].astype(compute_dtype)
        bi = b_all[:, i * head_pad:(i + 1) * head_pad].astype(compute_dtype)
        s = jax.lax.dot_general(ai, bi, (((1,), (1,)), ((), ())),
                                preferred_element_type=jnp.float32)
        scores.append(s + mask)

    # One batched softmax chain over all heads and all batch elements in the block.
    s_stack = jnp.concatenate(scores, axis=0)                         # (k*R, R)
    s_stack = s_stack - jnp.max(s_stack, axis=-1, keepdims=True)
    e = jnp.exp(s_stack)
    inv = pl.reciprocal(jnp.sum(e, axis=-1, keepdims=True), approx=True)
    h_stack = (e * inv).astype(compute_dtype)           # single cast for all heads

    # Output fuse: Wf head blocks are row-tiled to R and lane-padded to 128, so the
    # reference's concat+linear is k MXU-height matmuls accumulated in f32.
    acc = jnp.zeros((R, o_ref.shape[-1]), jnp.float32)
    for i in range(k):
        acc = acc + jnp.dot(h_stack[i * R:(i + 1) * R], wf_ref[i],
                            preferred_element_type=jnp.float32)       # (R, lane_pad)

    # Final softmax: the lane mask is folded into the padded bias (-1e30 in lanes >= C).
    z = acc + bf_ref[...]
    z = z - jnp.max(z, axis=-1, keepdims=True)
    ez = jnp.exp(z)
    inv2 = pl.reciprocal(jnp.sum(ez, axis=-1, keepdims=True), approx=True)
    o_ref[...] = ez * inv2                               # lane-dense (R, 128) store


def multi_head_attention_layer(x, params, *, k, channel_num, batch_block=None,
                               target_rows=256, compute_dtype=jnp.float32):
    """x:(B,C,L) float32 -> (B,C,C) float32 (multi-head channel attention)."""
    B, C, L = x.shape
    assert C == channel_num
    w1, b1, w2, b2, wf, bf = params
    M = w1.shape[-1]
    align = 16 if jnp.dtype(compute_dtype).itemsize == 2 else 8
    Bt = (_choose_batch_block(B, C, target_rows, align)
          if batch_block is None else batch_block)
    Bp = _round_up(B, Bt)
    R = Bt * C
    lane_pad = _round_up(C, _LANE)
    head_pad = _round_up(M, _LANE)

    # One-time layout plumbing (wrapper side, XLA): head-fused + lane-padded
    # projection weights/biases, block-diag mask, row-tiled lane-padded Wf, and a
    # fuse bias whose pad lanes carry -1e30 (kills them in the final softmax).
    w1p = jnp.zeros((k, L, head_pad), compute_dtype).at[:, :, :M].set(w1.astype(compute_dtype))
    w2p = jnp.zeros((k, L, head_pad), compute_dtype).at[:, :, :M].set(w2.astype(compute_dtype))
    w1c = jnp.transpose(w1p, (1, 0, 2)).reshape(L, k * head_pad)
    w2c = jnp.transpose(w2p, (1, 0, 2)).reshape(L, k * head_pad)
    b1c = jnp.zeros((k, head_pad), jnp.float32).at[:, :M].set(
        b1.astype(jnp.float32)).reshape(1, k * head_pad)
    b2c = jnp.zeros((k, head_pad), jnp.float32).at[:, :M].set(
        b2.astype(jnp.float32)).reshape(1, k * head_pad)
    mask = _block_diag_mask(Bt, C)                                          # (R, R)
    wf_pad = jnp.zeros((k, C, lane_pad), compute_dtype).at[:, :, :C].set(
        wf.reshape(k, C, C).astype(compute_dtype))
    wf_tiled = jnp.tile(wf_pad, (1, R // C, 1))                             # (k, R, lane_pad)
    bfp = jnp.full((1, lane_pad), _NEG_INF, jnp.float32).at[:, :C].set(
        bf.reshape(1, C).astype(jnp.float32))

    x2 = jnp.zeros((Bp, C, L), compute_dtype).at[:B].set(x.astype(compute_dtype))
    x2 = x2.reshape(Bp * C, L)

    kernel = functools.partial(_mha_kernel, k=k, head_pad=head_pad,
                               compute_dtype=compute_dtype)

    out = pl.pallas_call(
        kernel,
        out_shape=jax.ShapeDtypeStruct((Bp * C, lane_pad), jnp.float32),
        grid_spec=pltpu.PrefetchScalarGridSpec(
            num_scalar_prefetch=0,
            grid=(Bp // Bt,),
            in_specs=[
                pl.BlockSpec((R, L), lambda i: (i, 0)),               # x rows (batch folded)
                pl.BlockSpec((L, k * head_pad), lambda i: (0, 0)),    # W1 (fused, padded)
                pl.BlockSpec((1, k * head_pad), lambda i: (0, 0)),    # b1
                pl.BlockSpec((L, k * head_pad), lambda i: (0, 0)),    # W2
                pl.BlockSpec((1, k * head_pad), lambda i: (0, 0)),    # b2
                pl.BlockSpec((R, R), lambda i: (0, 0)),               # block-diag mask
                pl.BlockSpec((k, R, lane_pad), lambda i: (0, 0, 0)),  # Wf tiled/padded
                pl.BlockSpec((1, lane_pad), lambda i: (0, 0)),        # bf (+ -inf pad lanes)
            ],
            out_specs=pl.BlockSpec((R, lane_pad), lambda i: (i, 0)),
        ),
        compiler_params=pltpu.CompilerParams(dimension_semantics=("parallel",)),
    )(x2, w1c, b1c, w2c, b2c, mask, wf_tiled, bfp)

    return out.reshape(Bp, C, lane_pad)[:B, :, :C]


# ---------------------------------------------------------------------------
# Parameters and pure-JAX references (PyTorch semantics).
# ---------------------------------------------------------------------------
def init_params(key, *, data_in_length, data_middle_length, k, channel_num):
    keys = jax.random.split(key, 6)
    L, M, C = data_in_length, data_middle_length, channel_num
    s_lin = 1.0 / jnp.sqrt(L)
    s_out = 1.0 / jnp.sqrt(k * C)
    w1 = jax.random.uniform(keys[0], (k, L, M), jnp.float32, -s_lin, s_lin)
    b1 = jax.random.uniform(keys[1], (k, M), jnp.float32, -s_lin, s_lin)
    w2 = jax.random.uniform(keys[2], (k, L, M), jnp.float32, -s_lin, s_lin)
    b2 = jax.random.uniform(keys[3], (k, M), jnp.float32, -s_lin, s_lin)
    wf = jax.random.uniform(keys[4], (k * C, C), jnp.float32, -s_out, s_out)
    bf = jax.random.uniform(keys[5], (1, C), jnp.float32, -s_out, s_out)
    return w1, b1, w2, b2, wf, bf


def reference_self_attention(x, w1, b1, w2, b2):
    a = x @ w1 + b1
    b = x @ w2 + b2
    s = jnp.einsum("bcm,bdm->bcd", a, b)
    return jax.nn.softmax(s, axis=-1)


def reference_multi_head(x, params, *, k):
    w1, b1, w2, b2, wf, bf = params
    heads = []
    for i in range(k):
        a = x @ w1[i] + b1[i]
        b = x @ w2[i] + b2[i]
        s = jnp.einsum("bcm,bdm->bcd", a, b)
        heads.append(jax.nn.softmax(s, axis=2))
    cat = jnp.concatenate(heads, axis=2)
    z = cat @ wf + bf[0]
    return jax.nn.softmax(z, axis=2)


if __name__ == "__main__":
    # Small shapes consistent with the module: dataInLength=16, dataMiddleLength=32,
    # k=5 heads, channelNum=6, batch=4.  With C=6 the batch block rounds B up to a
    # sublane-aligned folded row count (R = Bt*C), so the whole batch runs in one
    # MXU-height grid step.
    B, C, L, M, K = 4, 6, 16, 32, 5

    key = jax.random.PRNGKey(0)
    k_x, k_p = jax.random.split(key)
    x = jax.random.normal(k_x, (B, C, L), jnp.float32)
    params = init_params(k_p, data_in_length=L, data_middle_length=M,
                         k=K, channel_num=C)
    w1, b1, w2, b2, wf, bf = params

    # 1) Single-head kernel == selfAttentionLayer.forward (uses head 0's weights).
    out_sa = jax.block_until_ready(self_attention_layer(x, w1[0], b1[0], w2[0], b2[0]))
    ref_sa = reference_self_attention(x, w1[0], b1[0], w2[0], b2[0])
    assert out_sa.shape == (B, C, C)
    assert bool(jnp.allclose(out_sa, ref_sa, atol=5e-3, rtol=5e-3))

    # 2) Multi-head kernel, float32 compute path (recommended default on v5e).
    out = jax.block_until_ready(
        multi_head_attention_layer(x, params, k=K, channel_num=C))
    ref = reference_multi_head(x, params, k=K)
    assert out.shape == (B, C, C)
    assert bool(jnp.allclose(out, ref, atol=5e-3, rtol=5e-3))

    # 3) bf16 matmul operands / f32 accumulation (recommended on v6e/v7x).
    out_bf16 = jax.block_until_ready(
        multi_head_attention_layer(x, params, k=K, channel_num=C,
                                   compute_dtype=jnp.bfloat16))
    assert bool(jnp.allclose(out_bf16.sum(-1), 1.0, atol=2e-2))      # valid softmax rows
    assert float(jnp.max(jnp.abs(out_bf16 - ref))) < 0.1             # bf16 smoke check

    print("KERNEL_OK")
</pallas_src>

<mosaic_0001>
module attributes {stable_mosaic.version = 11 : i64} {
  func.func @_self_attn_kernel(%arg0: i32, %arg1: memref<24x16xf32, #tpu.memory_space<vmem>>, %arg2: memref<16x32xf32, #tpu.memory_space<vmem>>, %arg3: memref<1x32xf32, #tpu.memory_space<vmem>>, %arg4: memref<16x32xf32, #tpu.memory_space<vmem>>, %arg5: memref<1x32xf32, #tpu.memory_space<vmem>>, %arg6: memref<24x24xf32, #tpu.memory_space<vmem>>, %arg7: memref<24x128xf32, #tpu.memory_space<vmem>>, %arg8: memref<24x128xf32, #tpu.memory_space<vmem>>) attributes {dimension_semantics = [#tpu.dimension_semantics<parallel>], iteration_bounds = array<i64: 1>, scalar_prefetch = 0 : i64, scratch_operands = 0 : i64, tpu.core_type = #tpu.core_type<tc>, window_params = [{transform_indices = @transform_0, window_bounds = array<i64: 24, 16>}, {pipeline_mode = #tpu.pipeline_mode<synchronous>, transform_indices = @transform_1, window_bounds = array<i64: 16, 32>}, {pipeline_mode = #tpu.pipeline_mode<synchronous>, transform_indices = @transform_2, window_bounds = array<i64: 1, 32>}, {pipeline_mode = #tpu.pipeline_mode<synchronous>, transform_indices = @transform_3, window_bounds = array<i64: 16, 32>}, {pipeline_mode = #tpu.pipeline_mode<synchronous>, transform_indices = @transform_4, window_bounds = array<i64: 1, 32>}, {pipeline_mode = #tpu.pipeline_mode<synchronous>, transform_indices = @transform_5, window_bounds = array<i64: 24, 24>}, {pipeline_mode = #tpu.pipeline_mode<synchronous>, transform_indices = @transform_6, window_bounds = array<i64: 24, 128>}, {transform_indices = @transform_7, window_bounds = array<i64: 24, 128>}]} {
    %c0 = arith.constant 0 : index
    %c0_0 = arith.constant 0 : index
    %0 = vector.load %arg1[%c0, %c0_0] : memref<24x16xf32, #tpu.memory_space<vmem>>, vector<24x16xf32>
    %c0_1 = arith.constant 0 : index
    %c0_2 = arith.constant 0 : index
    %1 = vector.load %arg2[%c0_1, %c0_2] : memref<16x32xf32, #tpu.memory_space<vmem>>, vector<16x32xf32>
    %cst = arith.constant dense<0.000000e+00> : vector<24x32xf32>
    %2 = tpu.matmul %0, %1, %cst {dimension_numbers = #tpu.dot_dimension_numbers<[1], [0], [0], [1], [0, 0, 1, 1], [], []>} : vector<24x16xf32>, vector<16x32xf32>, vector<24x32xf32> -> vector<24x32xf32>
    %c0_3 = arith.constant 0 : index
    %c0_4 = arith.constant 0 : index
    %3 = vector.load %arg3[%c0_3, %c0_4] : memref<1x32xf32, #tpu.memory_space<vmem>>, vector<1x32xf32>
    %4 = vector.broadcast %3 : vector<1x32xf32> to vector<24x32xf32>
    %5 = arith.addf %2, %4 : vector<24x32xf32>
    %c0_5 = arith.constant 0 : index
    %c0_6 = arith.constant 0 : index
    %6 = vector.load %arg4[%c0_5, %c0_6] : memref<16x32xf32, #tpu.memory_space<vmem>>, vector<16x32xf32>
    %cst_7 = arith.constant dense<0.000000e+00> : vector<24x32xf32>
    %7 = tpu.matmul %0, %6, %cst_7 {dimension_numbers = #tpu.dot_dimension_numbers<[1], [0], [0], [1], [0, 0, 1, 1], [], []>} : vector<24x16xf32>, vector<16x32xf32>, vector<24x32xf32> -> vector<24x32xf32>
    %c0_8 = arith.constant 0 : index
    %c0_9 = arith.constant 0 : index
    %8 = vector.load %arg5[%c0_8, %c0_9] : memref<1x32xf32, #tpu.memory_space<vmem>>, vector<1x32xf32>
    %9 = vector.broadcast %8 : vector<1x32xf32> to vector<24x32xf32>
    %10 = arith.addf %7, %9 : vector<24x32xf32>
    %cst_10 = arith.constant dense<0.000000e+00> : vector<24x24xf32>
    %11 = tpu.matmul %5, %10, %cst_10 {dimension_numbers = #tpu.dot_dimension_numbers<[1], [1], [0], [0], [0, 0, 1, 0], [], []>} : vector<24x32xf32>, vector<24x32xf32>, vector<24x24xf32> -> vector<24x24xf32>
    %c0_11 = arith.constant 0 : index
    %c0_12 = arith.constant 0 : index
    %12 = vector.load %arg6[%c0_11, %c0_12] : memref<24x24xf32, #tpu.memory_space<vmem>>, vector<24x24xf32>
    %13 = arith.addf %11, %12 : vector<24x24xf32>
    %cst_13 = arith.constant dense<0xFF800000> : vector<24xf32>
    %14 = vector.multi_reduction <maximumf>, %13, %cst_13 [1] : vector<24x24xf32> to vector<24xf32>
    %15 = vector.shape_cast %14 : vector<24xf32> to vector<24x1xf32>
    %16 = vector.broadcast %15 : vector<24x1xf32> to vector<24x24xf32>
    %17 = arith.subf %13, %16 : vector<24x24xf32>
    %18 = math.exp %17 : vector<24x24xf32>
    %cst_14 = arith.constant dense<0.000000e+00> : vector<24xf32>
    %19 = vector.multi_reduction <add>, %18, %cst_14 [1] : vector<24x24xf32> to vector<24xf32>
    %20 = vector.shape_cast %19 : vector<24xf32> to vector<24x1xf32>
    %21 = tpu.reciprocal %20 {approx = true} : vector<24x1xf32> -> vector<24x1xf32>
    %22 = vector.broadcast %21 : vector<24x1xf32> to vector<24x24xf32>
    %23 = arith.mulf %18, %22 : vector<24x24xf32>
    %c0_15 = arith.constant 0 : index
    %c0_16 = arith.constant 0 : index
    %24 = vector.load %arg7[%c0_15, %c0_16] : memref<24x128xf32, #tpu.memory_space<vmem>>, vector<24x128xf32>
    %cst_17 = arith.constant dense<0.000000e+00> : vector<24x128xf32>
    %25 = tpu.matmul %23, %24, %cst_17 {dimension_numbers = #tpu.dot_dimension_numbers<[1], [0], [0], [1], [0, 0, 1, 1], [], []>} : vector<24x24xf32>, vector<24x128xf32>, vector<24x128xf32> -> vector<24x128xf32>
    %c0_18 = arith.constant 0 : index
    %c0_19 = arith.constant 0 : index
    %26 = vector.load %arg8[%c0_18, %c0_19] : memref<24x128xf32, #tpu.memory_space<vmem>>, vector<24x128xf32>
    tpu.vector_store %arg8[%c0_18, %c0_19], %25 {strides = array<i32>} : memref<24x128xf32, #tpu.memory_space<vmem>>, vector<24x128xf32>,
    return
  }
  func.func @transform_0(%arg0: i32) -> (i32, i32) {
    %c0_i32 = arith.constant 0 : i32
    %c0_i32_0 = arith.constant 0 : i32
    return %arg0, %c0_i32 : i32, i32
  }
  func.func @transform_1(%arg0: i32) -> (i32, i32) {
    %c0_i32 = arith.constant 0 : i32
    %c0_i32_0 = arith.constant 0 : i32
    %c0_i32_1 = arith.constant 0 : i32
    return %c0_i32, %c0_i32_0 : i32, i32
  }
  func.func @transform_2(%arg0: i32) -> (i32, i32) {
    %c0_i32 = arith.constant 0 : i32
    %c0_i32_0 = arith.constant 0 : i32
    %c0_i32_1 = arith.constant 0 : i32
    return %c0_i32, %c0_i32_0 : i32, i32
  }
  func.func @transform_3(%arg0: i32) -> (i32, i32) {
    %c0_i32 = arith.constant 0 : i32
    %c0_i32_0 = arith.constant 0 : i32
    %c0_i32_1 = arith.constant 0 : i32
    return %c0_i32, %c0_i32_0 : i32, i32
  }
  func.func @transform_4(%arg0: i32) -> (i32, i32) {
    %c0_i32 = arith.constant 0 : i32
    %c0_i32_0 = arith.constant 0 : i32
    %c0_i32_1 = arith.constant 0 : i32
    return %c0_i32, %c0_i32_0 : i32, i32
  }
  func.func @transform_5(%arg0: i32) -> (i32, i32) {
    %c0_i32 = arith.constant 0 : i32
    %c0_i32_0 = arith.constant 0 : i32
    %c0_i32_1 = arith.constant 0 : i32
    return %c0_i32, %c0_i32_0 : i32, i32
  }
  func.func @transform_6(%arg0: i32) -> (i32, i32) {
    %c0_i32 = arith.constant 0 : i32
    %c0_i32_0 = arith.constant 0 : i32
    %c0_i32_1 = arith.constant 0 : i32
    return %c0_i32, %c0_i32_0 : i32, i32
  }
  func.func @transform_7(%arg0: i32) -> (i32, i32) {
    %c0_i32 = arith.constant 0 : i32
    %c0_i32_0 = arith.constant 0 : i32
    return %arg0, %c0_i32 : i32, i32
  }
}

</mosaic_0001>

<llo_original>
// kernel: tpu_custom_call.1
$region0: #{tpu_custom_call.1}
  #allocation0 [shape = 'u32[]', space=smem, size = 0x4, offset = 0x4, fixed_abs, tag = 'smem constant byte address 0x4 - core index']
  #allocation1 [shape = 'u32[72,128]{1,0:T(1,128)}', space=vmem, size = 0x9000, scoped, tag = 'internal scratch']
  %s0 = inlined_call_operand.vmem [shape: f32[24,16], index: 0, kind: input, shape index: {}]
  %s1 = inlined_call_operand.vmem [shape: f32[16,32], index: 1, kind: input, shape index: {}]
  %s2 = inlined_call_operand.vmem [shape: f32[1,32], index: 2, kind: input, shape index: {}]
  %s3 = inlined_call_operand.hbm [shape: f32[16,32], index: 3, kind: input, shape index: {}]
  %s4 = inlined_call_operand.vmem [shape: f32[1,32], index: 4, kind: input, shape index: {}]
  %s5 = inlined_call_operand.vmem [shape: f32[24,24], index: 5, kind: input, shape index: {}]
  %s6 = inlined_call_operand.hbm [shape: f32[24,128], index: 6, kind: input, shape index: {}]
  %s7 = inlined_call_operand.hbm [shape: f32[24,128], index: 7, kind: output, shape index: {}]
  %s8 = sld [smem:[#allocation0]]
  $region46: #{tpu_custom_call.1} parent=0
    _
  %s10 = ssub.s32 1, %s8
  %s11 = scalar_select 0, %s10, %s8
  $region1: #{tpu_custom_call.1} parent=0
    #allocation2 [shape = 'u8[8192]{0}', space=vmem, size = 0x2000, scoped, tag = 'input window, operand 3, single buffered']
    #allocation3 [shape = 's32[1]{0}', space=sflag, size = 0x4, scoped, tag = 'scoped memory for tpu_custom_call.1']
    #allocation4 [shape = 's32[1]{0}', space=sflag, size = 0x4, scoped, tag = 'scoped memory for tpu_custom_call.1']
    #allocation5 [shape = 'u8[12288]{0}', space=vmem, size = 0x3000, scoped, tag = 'input window, operand 6, single buffered']
    #allocation6 [shape = 's32[1]{0}', space=sflag, size = 0x4, scoped, tag = 'scoped memory for tpu_custom_call.1']
    #allocation7 [shape = 'u8[12288]{0}', space=vmem, size = 0x3000, scoped, tag = 'output window, operand 0, single buffered']
    %12 = vsyncpa [#allocation3], 0
    %13 = vsyncpa [#allocation6], 0
    %14 = vsyncpa [#allocation4], 0
    // Predicated region
    $region2: #{tpu_custom_call.1} parent=1 // pred_check
      _
    $region3: #{tpu_custom_call.1} parent=1 // pred_check_branch
      %16 = sbr.rel (0) target = $region5
    $region4: #{tpu_custom_call.1} parent=1 // pred_region
      _
    $region5: #{tpu_custom_call.1} parent=1 // pred_fallthru
      _
    // Predicated region
    $region6: #{tpu_custom_call.1} parent=1 // pred_check
      _
    $region7: #{tpu_custom_call.1} parent=1 // pred_check_branch
      %18 = sbr.rel (0) target = $region9
    $region8: #{tpu_custom_call.1} parent=1 // pred_region
      _
    $region9: #{tpu_custom_call.1} parent=1 // pred_fallthru
      _
    // Predicated region
    $region10: #{tpu_custom_call.1} parent=1 // pred_check
      _
    $region11: #{tpu_custom_call.1} parent=1 // pred_check_branch
      %20 = sbr.rel (0) target = $region13
    $region12: #{tpu_custom_call.1} parent=1 // pred_region
      _
    $region13: #{tpu_custom_call.1} parent=1 // pred_fallthru
      _
    // Predicated region
    $region14: #{tpu_custom_call.1} parent=1 // pred_check
      _
    $region15: #{tpu_custom_call.1} parent=1 // pred_check_branch
      %22 = sbr.rel (0) target = $region17
    $region16: #{tpu_custom_call.1} parent=1 // pred_region
      %24 = vsyncadd [#allocation3], 0
      %s25 = sshll.u32 %s3, 4
      %s26 = int_to_ptr.hbm [resolvable:$true] %s25
      %s27 = sshll.u32 [#allocation2], 4
      %s28 = int_to_ptr.vmem [resolvable:$true] %s27
      %33 = dma.hbm_to_vmem [thread:$0]  %s26, 256, %s28, [#allocation3], 128, 128, 8
    $region17: #{tpu_custom_call.1} parent=1 // pred_fallthru
      _
    // Predicated region
    $region18: #{tpu_custom_call.1} parent=1 // pred_check
      _
    $region19: #{tpu_custom_call.1} parent=1 // pred_check_branch
      %35 = sbr.rel (0) target = $region21
    $region20: #{tpu_custom_call.1} parent=1 // pred_region
      _
    $region21: #{tpu_custom_call.1} parent=1 // pred_fallthru
      _
    // Predicated region
    $region22: #{tpu_custom_call.1} parent=1 // pred_check
      _
    $region23: #{tpu_custom_call.1} parent=1 // pred_check_branch
      %37 = sbr.rel (0) target = $region25
    $region24: #{tpu_custom_call.1} parent=1 // pred_region
      _
    $region25: #{tpu_custom_call.1} parent=1 // pred_fallthru
      _
    // Predicated region
    $region26: #{tpu_custom_call.1} parent=1 // pred_check
      _
    $region27: #{tpu_custom_call.1} parent=1 // pred_check_branch
      %39 = sbr.rel (0) target = $region29
    $region28: #{tpu_custom_call.1} parent=1 // pred_region
      %41 = vsyncadd [#allocation6], 0
      %s42 = sshll.u32 %s6, 4
      %s43 = int_to_ptr.hbm [resolvable:$true] %s42
      %s44 = sshll.u32 [#allocation5], 4
      %s45 = int_to_ptr.vmem [resolvable:$true] %s44
      %50 = dma.hbm_to_vmem [thread:$0]  %s43, 384, %s45, [#allocation6], 128, 128, 8
    $region29: #{tpu_custom_call.1} parent=1 // pred_fallthru
      _
    // Predicated region
    $region30: #{tpu_custom_call.1} parent=1 // pred_check
      _
    $region31: #{tpu_custom_call.1} parent=1 // pred_check_branch
      %52 = sbr.rel (0) target = $region33
    $region32: #{tpu_custom_call.1} parent=1 // pred_region
      %54 = dma.done [#allocation3], 256
    $region33: #{tpu_custom_call.1} parent=1 // pred_fallthru
      _
    // Predicated region
    $region34: #{tpu_custom_call.1} parent=1 // pred_check
      _
    $region35: #{tpu_custom_call.1} parent=1 // pred_check_branch
      %56 = sbr.rel (0) target = $region37
    $region36: #{tpu_custom_call.1} parent=1 // pred_region
      %58 = dma.done [#allocation6], 384
    $region37: #{tpu_custom_call.1} parent=1 // pred_fallthru
      _
    %v59 = vld [vmem:[%s0] sm:$0xff]
    %v60 = vld [vmem:[%s0 + $0x8] sm:$0xff]
    %v61 = vld [vmem:[%s0 + $0x10] sm:$0xff]
    %v62 = vld [vmem:[%s1] sm:$0xff]
    %v63 = vld [vmem:[%s1 + $0x8] sm:$0xff]
    %v64 = vld [vmem:[%s2] sm:$0x1]
    %v66 = vperm.slane %v64, 0
    %vm68 = vcmask 130048
    %v70 = vsel %vm68, %v59, 0
    %v73 = vsel %vm68, %v60, 0
    %v76 = vsel %vm68, %v61, 0
    %78 = vmatpush.msra.mxu0 0.0
    %79 = vmatpush.msra.mxu0 0.0
    %80 = vmatpush.msra.mxu0 0.0
    %81 = vmatpush.msra.mxu0 0.0
    %82 = vmatpush.msra.mxu0 0.0
    %83 = vmatpush.msra.mxu0 0.0
    %84 = vmatpush.msra.mxu0 0.0
    %85 = vmatpush.msra.mxu0 0.0
    %86 = vmatpush.msra.mxu0 0.0
    %87 = vmatpush.msra.mxu0 0.0
    %88 = vmatpush.msra.mxu0 0.0
    %89 = vmatpush.msra.mxu0 0.0
    %90 = vmatpush.msra.mxu0 0.0
    %91 = vmatpush.msra.mxu0 0.0
    %92 = vmatpush.msra.mxu0 %v63
    %93 = vmatpush.msra.mxu0 %v62
    %94 = vmatmul.f32.gmra.mxu0 %v70
    %v95 = vpop.f32.mrf.mxu0
    %v96 = vadd.f32 %v66, %v95
    %97 = vmatmul.f32.gmra.mxu0 %v73
    %v98 = vpop.f32.mrf.mxu0
    %v99 = vadd.f32 %v66, %v98
    %100 = vmatmul.f32.gmra.mxu0 %v76
    %v101 = vpop.f32.mrf.mxu0
    %v102 = vadd.f32 %v66, %v101
    %103 = vdwg.mxu0
    %v104 = vld [vmem:[#allocation2] sm:$0xff]
    %v105 = vld [vmem:[#allocation2 + $0x8] sm:$0xff]
    %v106 = vld [vmem:[%s4] sm:$0x1]
    %v108 = vperm.slane %v106, 0
    %110 = vmatpush.msra.mxu0 0.0
    %111 = vmatpush.msra.mxu0 0.0
    %112 = vmatpush.msra.mxu0 0.0
    %113 = vmatpush.msra.mxu0 0.0
    %114 = vmatpush.msra.mxu0 0.0
    %115 = vmatpush.msra.mxu0 0.0
    %116 = vmatpush.msra.mxu0 0.0
    %117 = vmatpush.msra.mxu0 0.0
    %118 = vmatpush.msra.mxu0 0.0
    %119 = vmatpush.msra.mxu0 0.0
    %120 = vmatpush.msra.mxu0 0.0
    %121 = vmatpush.msra.mxu0 0.0
    %122 = vmatpush.msra.mxu0 0.0
    %123 = vmatpush.msra.mxu0 0.0
    %124 = vmatpush.msra.mxu0 %v105
    %125 = vmatpush.msra.mxu0 %v104
    %126 = vmatmul.f32.gmra.mxu0 %v70
    %v127 = vpop.f32.mrf.mxu0
    %v128 = vadd.f32 %v108, %v127
    %129 = vmatmul.f32.gmra.mxu0 %v73
    %v130 = vpop.f32.mrf.mxu0
    %v131 = vadd.f32 %v108, %v130
    %132 = vmatmul.f32.gmra.mxu0 %v76
    %v133 = vpop.f32.mrf.mxu0
    %v134 = vadd.f32 %v108, %v133
    %135 = vdwg.mxu0
    %v136 = vld [vmem:[%s5] sm:$0xff]
    %v137 = vld [vmem:[%s5 + $0x8] sm:$0xff]
    %v138 = vld [vmem:[%s5 + $0x10] sm:$0xff]
    %vm139 = vcmask 261120
    %v141 = vsel %vm139, %v96, 0
    %v144 = vsel %vm139, %v99, 0
    %v147 = vsel %vm139, %v102, 0
    %v150 = vsel %vm139, %v128, 0
    %v153 = vsel %vm139, %v131, 0
    %v156 = vsel %vm139, %v134, 0
    %158 = vmatpush.xpose.msra.mxu0 0.0
    %159 = vmatpush.xpose.msra.mxu0 0.0
    %160 = vmatpush.xpose.msra.mxu0 0.0
    %161 = vmatpush.xpose.msra.mxu0 0.0
    %162 = vmatpush.xpose.msra.mxu0 0.0
    %163 = vmatpush.xpose.msra.mxu0 0.0
    %164 = vmatpush.xpose.msra.mxu0 0.0
    %165 = vmatpush.xpose.msra.mxu0 0.0
    %166 = vmatpush.xpose.msra.mxu0 0.0
    %167 = vmatpush.xpose.msra.mxu0 0.0
    %168 = vmatpush.xpose.msra.mxu0 0.0
    %169 = vmatpush.xpose.msra.mxu0 0.0
    %170 = vmatpush.xpose.msra.mxu0 0.0
    %171 = vmatpush.xpose.msra.mxu0 %v156
    %172 = vmatpush.xpose.msra.mxu0 %v153
    %173 = vmatpush.xpose.msra.mxu0 %v150
    %174 = vmatmul.f32.gmra.mxu0 %v141
    %v175 = vpop.f32.mrf.mxu0
    %v176 = vadd.f32 %v136, %v175
    %177 = vmatmul.f32.gmra.mxu0 %v144
    %v178 = vpop.f32.mrf.mxu0
    %v179 = vadd.f32 %v137, %v178
    %180 = vmatmul.f32.gmra.mxu0 %v147
    %v181 = vpop.f32.mrf.mxu0
    %v182 = vadd.f32 %v138, %v181
    %183 = vdwg.mxu0
    %vm184 = vcmask 195584
    %v185 = vsel %vm184, %v176, -inf
    %186 = vmax.xlane.f32.xlu0 %v185
    %v187 = vpop.xlane.xlu0 %186
    %v188 = vsel %vm184, %v179, -inf
    %189 = vmax.xlane.f32.xlu0 %v188
    %v190 = vpop.xlane.xlu0 %189
    %v191 = vsel %vm184, %v182, -inf
    %192 = vmax.xlane.f32.xlu0 %v191
    %v193 = vpop.xlane.xlu0 %192
    %v194 = vsub.f32 %v176, %v187
    %v195 = vsub.f32 %v179, %v190
    %v196 = vsub.f32 %v182, %v193
    %v197 = vmul.f32 %v194, 1.442695
    %v198 = vpow.pop %v197
    %v199 = vmul.f32 %v195, 1.442695
    %v200 = vpow.pop %v199
    %v201 = vmul.f32 %v196, 1.442695
    %v202 = vpow.pop %v201
    %v203 = vsel %vm184, %v198, 0.0
    %204 = vadd.xlane.f32.xlu0 %v203
    %v205 = vpop.xlane.xlu0 %204
    %v206 = vsel %vm184, %v200, 0.0
    %207 = vadd.xlane.f32.xlu0 %v206
    %v208 = vpop.xlane.xlu0 %207
    %v209 = vsel %vm184, %v202, 0.0
    %210 = vadd.xlane.f32.xlu0 %v209
    %v211 = vpop.xlane.xlu0 %210
    %v212 = vrcp.pop %v205
    %v213 = vrcp.pop %v208
    %v214 = vrcp.pop %v211
    %v215 = vmul.f32 %v198, %v212
    %v216 = vmul.f32 %v200, %v213
    %v217 = vmul.f32 %v202, %v214
    %v218 = vld [vmem:[#allocation5] sm:$0xff]
    %v219 = vld [vmem:[#allocation5 + $0x8] sm:$0xff]
    %v220 = vld [vmem:[#allocation5 + $0x10] sm:$0xff]
    %v222 = vsel %vm184, %v215, 0
    %v225 = vsel %vm184, %v216, 0
    %v228 = vsel %vm184, %v217, 0
    %230 = vmatpush.msra.mxu0 0.0
    %231 = vmatpush.msra.mxu0 0.0
    %232 = vmatpush.msra.mxu0 0.0
    %233 = vmatpush.msra.mxu0 0.0
    %234 = vmatpush.msra.mxu0 0.0
    %235 = vmatpush.msra.mxu0 0.0
    %236 = vmatpush.msra.mxu0 0.0
    %237 = vmatpush.msra.mxu0 0.0
    %238 = vmatpush.msra.mxu0 0.0
    %239 = vmatpush.msra.mxu0 0.0
    %240 = vmatpush.msra.mxu0 0.0
    %241 = vmatpush.msra.mxu0 0.0
    %242 = vmatpush.msra.mxu0 0.0
    %243 = vmatpush.msra.mxu0 %v220
    %244 = vmatpush.msra.mxu0 %v219
    %245 = vmatpush.msra.mxu0 %v218
    %246 = vmatmul.f32.gmra.mxu0 %v222
    %v247 = vpop.f32.mrf.mxu0
    %v248 = vadd.f32 0.0, %v247
    %249 = vmatmul.f32.gmra.mxu0 %v225
    %v250 = vpop.f32.mrf.mxu0
    %v251 = vadd.f32 0.0, %v250
    %252 = vmatmul.f32.gmra.mxu0 %v228
    %v253 = vpop.f32.mrf.mxu0
    %v254 = vadd.f32 0.0, %v253
    %255 = vdwg.mxu0
    %256 = vst [vmem:[#allocation7] sm:$0xff] %v248
    %257 = vst [vmem:[#allocation7 + $0x8] sm:$0xff] %v251
    %258 = vst [vmem:[#allocation7 + $0x10] sm:$0xff] %v254
    // Predicated region
    $region38: #{tpu_custom_call.1} parent=1 // pred_check
      _
    $region39: #{tpu_custom_call.1} parent=1 // pred_check_branch
      %260 = sbr.rel (0) target = $region41
    $region40: #{tpu_custom_call.1} parent=1 // pred_region
      %262 = vsyncadd [#allocation4], 0
      %s263 = sshll.u32 [#allocation7], 4
      %s264 = int_to_ptr.vmem [resolvable:$true] %s263
      %s265 = sshll.u32 %s7, 4
      %s266 = int_to_ptr.hbm [resolvable:$true] %s265
      %271 = dma.vmem_to_hbm [thread:$0]  %s264, 384, %s266, [#allocation4], 128, 128, 8
    $region41: #{tpu_custom_call.1} parent=1 // pred_fallthru
      _
    // Predicated region
    $region42: #{tpu_custom_call.1} parent=1 // pred_check
      _
    $region43: #{tpu_custom_call.1} parent=1 // pred_check_branch
      %273 = sbr.rel (0) target = $region45
    $region44: #{tpu_custom_call.1} parent=1 // pred_region
      %275 = dma.done [#allocation4], 384
    $region45: #{tpu_custom_call.1} parent=1 // pred_fallthru
      _
    %276 = vsyncpa [#allocation3], 1
    %277 = vsyncpa [#allocation6], 1
    %278 = vsyncpa [#allocation4], 1

</llo_original>
